<compile_context>
chip_gen: v7x
topology: tpu7x:2x2x1
jax: 0.10.0
libtpu: 0.0.40
codegen_flags: <defaults>
</compile_context>

<pallas_src>
import functools

import jax
import jax.numpy as jnp
from jax.experimental import pallas as pl
from jax.experimental.pallas import tpu as pltpu


# Fixed network dimensions from the PyTorch module.
F_IN = 4      # input features
H1 = 4        # trunk hidden 0
H2 = 4        # trunk hidden 1
T_OUT = 8     # trunk output (split into two halves of 4)
HEAD_IN = 4   # per-head input features

# Row offsets of each layer inside the packed (ROW_A + A, F_IN + 1) weight slab.
# Each layer starts on an 8-row boundary so every in-kernel ref slice is
# sublane-aligned.  Column layout per output unit j: [W^T[j, 0:4] | b[j]].
ROW_L1 = 0
ROW_L2 = 8
ROW_L3 = 16
ROW_V = 24
ROW_A = 32


def pack_params(params):
    """Pack all 5 Linear layers into one (ROW_A + A, F_IN + 1) f32 VMEM slab."""
    A = params["wa"].shape[1]
    slab = jnp.zeros((ROW_A + A, F_IN + 1), jnp.float32)

    def put(s, row0, w, b):
        # w stored (in, out), b stored (1, out)  ->  block (out, in + 1)
        blk = jnp.concatenate([w.T, b.T], axis=1).astype(jnp.float32)
        return s.at[row0:row0 + blk.shape[0], :].set(blk)

    slab = put(slab, ROW_L1, params["w1"], params["b1"])
    slab = put(slab, ROW_L2, params["w2"], params["b2"])
    slab = put(slab, ROW_L3, params["w3"], params["b3"])
    slab = put(slab, ROW_V, params["wv"], params["bv"])
    slab = put(slab, ROW_A, params["wa"], params["ba"])
    return slab


def dueling_q_kernel(w_ref, x_ref, out_ref, *, num_actions):
    """w_ref: packed (ROW_A+A, 5) params (VMEM, resident across grid steps).
    x_ref: (F_IN, TB) state tile, batch on lanes.
    out_ref: (1+A, TB) tile -- row 0 is value, rows 1.. are advantages."""
    A = num_actions
    x = x_ref[...]                                        # (F_IN, TB)

    def linear(h, h_row0, w_row0, n_out, relu):
        # y = sum_k bcast_sublanes(h[h_row0+k]) * bcast_lanes(W^T[:, k]) + b
        wb = w_ref[w_row0:w_row0 + n_out, :]              # (n_out, 5)
        acc = h[h_row0:h_row0 + 1, :] * wb[:, 0:1] + wb[:, F_IN:F_IN + 1]
        for k in range(1, F_IN):
            acc = acc + h[h_row0 + k:h_row0 + k + 1, :] * wb[:, k:k + 1]
        if relu:
            acc = jnp.maximum(acc, 0.0)
        return acc                                        # (n_out, TB)

    h1 = linear(x, 0, ROW_L1, H1, relu=True)
    h2 = linear(h1, 0, ROW_L2, H2, relu=True)
    trunk = linear(h2, 0, ROW_L3, T_OUT, relu=False)      # no ReLU on last MLP layer

    # torch.split(trunk, 4, dim=1) + F.relu on each half == ReLU on the whole
    # trunk, then rows 0:4 feed the value head and rows 4:8 the advantage head.
    t = jnp.maximum(trunk, 0.0)

    # Direct sub-slice stores (no concatenate / sublane shuffles).
    out_ref[0:1, :] = linear(t, 0, ROW_V, 1, relu=False)
    out_ref[1:1 + A, :] = linear(t, HEAD_IN, ROW_A, A, relu=False)


def _dueling_q_call(w_slab, x_t, num_actions, tile_b):
    """x_t: (F_IN, Bp) with Bp % tile_b == 0 and tile_b % 128 == 0.
    Returns (1+A, Bp) -- row 0 value, rows 1.. advantages (no layout ops)."""
    A = num_actions
    _, Bp = x_t.shape
    grid = (Bp // tile_b,)
    return pl.pallas_call(
        functools.partial(dueling_q_kernel, num_actions=A),
        out_shape=jax.ShapeDtypeStruct((1 + A, Bp), jnp.float32),
        grid=grid,
        in_specs=[
            # Whole param slab, same block every step -> stays VMEM-resident.
            pl.BlockSpec(w_slab.shape, lambda i: (0, 0)),
            pl.BlockSpec((F_IN, tile_b), lambda i: (0, i)),
        ],
        out_specs=pl.BlockSpec((1 + A, tile_b), lambda i: (0, i)),
        compiler_params=pltpu.CompilerParams(
            dimension_semantics=("parallel",),       # v7x: shard tiles over 2 TCs
            vmem_limit_bytes=32 * 1024 * 1024,       # explicit; fits v7x 64 MiB
        ),
    )(w_slab, x_t)


def dueling_q_forward(state, params, *, tile_b=1024):
    """PyTorch-compatible API.  state: (B, 4) f32; params as from init_params.
    Returns (value (B, 1), advantages (B, A)).

    TODO(synk): the downstream loss should keep the (features, B) layout
    end-to-end (call _dueling_q_call directly) and/or fuse the dueling combine
    Q = V + (A - max(A)) into the kernel, so the transpose/slice ops below and
    the extra HBM round-trip disappear.
    """
    B = state.shape[0]
    A = params["wa"].shape[1]

    # Lane-dense batch tile: multiple of 128, capped at tile_b; pad the batch
    # up to a whole number of tiles (Pallas does not bounds-check VMEM blocks).
    TB = int(min(tile_b, max(128, pl.next_power_of_2(B))))
    Bp = int(pl.cdiv(B, TB)) * TB

    x_t = jnp.zeros((F_IN, Bp), jnp.float32)
    x_t = x_t.at[:, :B].set(state.astype(jnp.float32).T)

    w_slab = pack_params(params)
    out_t = _dueling_q_call(w_slab, x_t, A, TB)           # (1+A, Bp)

    value = out_t[0:1, :B].T                              # (B, 1)
    advantages = out_t[1:, :B].T                          # (B, A)
    return value, advantages


def init_params(key, num_actions):
    """Deterministic init mimicking torch.nn.Linear default (uniform +-1/sqrt(fan_in)).
    Weights stored as (in, out); biases stored as (1, out)."""
    def linear(key, fan_in, fan_out):
        kw, kb = jax.random.split(key)
        bound = 1.0 / jnp.sqrt(float(fan_in))
        w = jax.random.uniform(kw, (fan_in, fan_out), jnp.float32, -bound, bound)
        b = jax.random.uniform(kb, (1, fan_out), jnp.float32, -bound, bound)
        return w, b

    k1, k2, k3, kv, ka = jax.random.split(key, 5)
    w1, b1 = linear(k1, F_IN, H1)               # trunk layer 0
    w2, b2 = linear(k2, H1, H2)                 # trunk layer 1
    w3, b3 = linear(k3, H2, T_OUT)              # trunk output layer
    wv, bv = linear(kv, HEAD_IN, 1)             # value head
    wa, ba = linear(ka, HEAD_IN, num_actions)   # advantage head
    return dict(w1=w1, b1=b1, w2=w2, b2=b2, w3=w3, b3=b3,
                wv=wv, bv=bv, wa=wa, ba=ba)


def reference_forward(state, p):
    """Plain-JAX reference of the PyTorch forward for correctness checking."""
    h1 = jnp.maximum(state @ p["w1"] + p["b1"], 0.0)
    h2 = jnp.maximum(h1 @ p["w2"] + p["b2"], 0.0)
    trunk = h2 @ p["w3"] + p["b3"]
    v_in = jnp.maximum(trunk[:, 0:4], 0.0)
    a_in = jnp.maximum(trunk[:, 4:8], 0.0)
    return v_in @ p["wv"] + p["bv"], a_in @ p["wa"] + p["ba"]


if __name__ == "__main__":
    key = jax.random.PRNGKey(0)
    k_params, k_state = jax.random.split(key)

    NUM_ACTIONS = 3   # len(legal_actions)
    params = init_params(k_params, NUM_ACTIONS)

    # Small batch (pads to one 128-lane tile, grid of 1).
    B_SMALL = 8
    state = jax.random.normal(k_state, (B_SMALL, F_IN), jnp.float32)
    value, advantages = dueling_q_forward(state, params)
    value = jax.block_until_ready(value)
    advantages = jax.block_until_ready(advantages)

    v_ref, a_ref = reference_forward(state, params)
    assert value.shape == (B_SMALL, 1) and advantages.shape == (B_SMALL, NUM_ACTIONS)
    assert jnp.allclose(value, v_ref, atol=1e-5), "value mismatch vs reference (B=8)"
    assert jnp.allclose(advantages, a_ref, atol=1e-5), "advantages mismatch vs reference (B=8)"

    # Larger batch exercising a multi-step parallel grid (3 lane-dense tiles of 128).
    B_BIG = 384
    state_big = jax.random.normal(jax.random.PRNGKey(1), (B_BIG, F_IN), jnp.float32)
    v_big, a_big = dueling_q_forward(state_big, params, tile_b=128)
    v_big = jax.block_until_ready(v_big)
    a_big = jax.block_until_ready(a_big)

    v_ref_b, a_ref_b = reference_forward(state_big, params)
    assert v_big.shape == (B_BIG, 1) and a_big.shape == (B_BIG, NUM_ACTIONS)
    assert jnp.allclose(v_big, v_ref_b, atol=1e-5), "value mismatch vs reference (B=384)"
    assert jnp.allclose(a_big, a_ref_b, atol=1e-5), "advantages mismatch vs reference (B=384)"

    print("KERNEL_OK")
</pallas_src>

<mosaic_0001>
module attributes {stable_mosaic.version = 11 : i64} {
  func.func @dueling_q_kernel(%arg0: i32, %arg1: memref<35x5xf32, #tpu.memory_space<vmem>>, %arg2: memref<4x128xf32, #tpu.memory_space<vmem>>, %arg3: memref<4x128xf32, #tpu.memory_space<vmem>>) attributes {dimension_semantics = [#tpu.dimension_semantics<parallel>], iteration_bounds = array<i64: 1>, scalar_prefetch = 0 : i64, scratch_operands = 0 : i64, tpu.core_type = #tpu.core_type<tc>, window_params = [{pipeline_mode = #tpu.pipeline_mode<synchronous>, transform_indices = @transform_0, window_bounds = array<i64: 35, 5>}, {transform_indices = @transform_1, window_bounds = array<i64: 4, 128>}, {transform_indices = @transform_2, window_bounds = array<i64: 4, 128>}]} {
    %c0 = arith.constant 0 : index
    %c0_0 = arith.constant 0 : index
    %0 = vector.load %arg2[%c0, %c0_0] : memref<4x128xf32, #tpu.memory_space<vmem>>, vector<4x128xf32>
    %c0_1 = arith.constant 0 : index
    %c0_2 = arith.constant 0 : index
    %1 = vector.load %arg1[%c0_1, %c0_2] : memref<35x5xf32, #tpu.memory_space<vmem>>, vector<4x5xf32>
    %2 = vector.extract_strided_slice %0 {offsets = [0, 0], sizes = [1, 128], strides = [1, 1]} : vector<4x128xf32> to vector<1x128xf32>
    %3 = vector.extract_strided_slice %1 {offsets = [0, 0], sizes = [4, 1], strides = [1, 1]} : vector<4x5xf32> to vector<4x1xf32>
    %4 = vector.broadcast %2 : vector<1x128xf32> to vector<4x128xf32>
    %5 = vector.broadcast %3 : vector<4x1xf32> to vector<4x128xf32>
    %6 = arith.mulf %4, %5 : vector<4x128xf32>
    %7 = vector.extract_strided_slice %1 {offsets = [0, 4], sizes = [4, 1], strides = [1, 1]} : vector<4x5xf32> to vector<4x1xf32>
    %8 = vector.broadcast %7 : vector<4x1xf32> to vector<4x128xf32>
    %9 = arith.addf %6, %8 : vector<4x128xf32>
    %10 = vector.extract_strided_slice %0 {offsets = [1, 0], sizes = [1, 128], strides = [1, 1]} : vector<4x128xf32> to vector<1x128xf32>
    %11 = vector.extract_strided_slice %1 {offsets = [0, 1], sizes = [4, 1], strides = [1, 1]} : vector<4x5xf32> to vector<4x1xf32>
    %12 = vector.broadcast %10 : vector<1x128xf32> to vector<4x128xf32>
    %13 = vector.broadcast %11 : vector<4x1xf32> to vector<4x128xf32>
    %14 = arith.mulf %12, %13 : vector<4x128xf32>
    %15 = arith.addf %9, %14 : vector<4x128xf32>
    %16 = vector.extract_strided_slice %0 {offsets = [2, 0], sizes = [1, 128], strides = [1, 1]} : vector<4x128xf32> to vector<1x128xf32>
    %17 = vector.extract_strided_slice %1 {offsets = [0, 2], sizes = [4, 1], strides = [1, 1]} : vector<4x5xf32> to vector<4x1xf32>
    %18 = vector.broadcast %16 : vector<1x128xf32> to vector<4x128xf32>
    %19 = vector.broadcast %17 : vector<4x1xf32> to vector<4x128xf32>
    %20 = arith.mulf %18, %19 : vector<4x128xf32>
    %21 = arith.addf %15, %20 : vector<4x128xf32>
    %22 = vector.extract_strided_slice %0 {offsets = [3, 0], sizes = [1, 128], strides = [1, 1]} : vector<4x128xf32> to vector<1x128xf32>
    %23 = vector.extract_strided_slice %1 {offsets = [0, 3], sizes = [4, 1], strides = [1, 1]} : vector<4x5xf32> to vector<4x1xf32>
    %24 = vector.broadcast %22 : vector<1x128xf32> to vector<4x128xf32>
    %25 = vector.broadcast %23 : vector<4x1xf32> to vector<4x128xf32>
    %26 = arith.mulf %24, %25 : vector<4x128xf32>
    %27 = arith.addf %21, %26 : vector<4x128xf32>
    %cst = arith.constant 0.000000e+00 : f32
    %28 = vector.broadcast %cst : f32 to vector<4x128xf32>
    %29 = arith.maximumf %27, %28 : vector<4x128xf32>
    %c8 = arith.constant 8 : index
    %c0_3 = arith.constant 0 : index
    %30 = vector.load %arg1[%c8, %c0_3] : memref<35x5xf32, #tpu.memory_space<vmem>>, vector<4x5xf32>
    %31 = vector.extract_strided_slice %29 {offsets = [0, 0], sizes = [1, 128], strides = [1, 1]} : vector<4x128xf32> to vector<1x128xf32>
    %32 = vector.extract_strided_slice %30 {offsets = [0, 0], sizes = [4, 1], strides = [1, 1]} : vector<4x5xf32> to vector<4x1xf32>
    %33 = vector.broadcast %31 : vector<1x128xf32> to vector<4x128xf32>
    %34 = vector.broadcast %32 : vector<4x1xf32> to vector<4x128xf32>
    %35 = arith.mulf %33, %34 : vector<4x128xf32>
    %36 = vector.extract_strided_slice %30 {offsets = [0, 4], sizes = [4, 1], strides = [1, 1]} : vector<4x5xf32> to vector<4x1xf32>
    %37 = vector.broadcast %36 : vector<4x1xf32> to vector<4x128xf32>
    %38 = arith.addf %35, %37 : vector<4x128xf32>
    %39 = vector.extract_strided_slice %29 {offsets = [1, 0], sizes = [1, 128], strides = [1, 1]} : vector<4x128xf32> to vector<1x128xf32>
    %40 = vector.extract_strided_slice %30 {offsets = [0, 1], sizes = [4, 1], strides = [1, 1]} : vector<4x5xf32> to vector<4x1xf32>
    %41 = vector.broadcast %39 : vector<1x128xf32> to vector<4x128xf32>
    %42 = vector.broadcast %40 : vector<4x1xf32> to vector<4x128xf32>
    %43 = arith.mulf %41, %42 : vector<4x128xf32>
    %44 = arith.addf %38, %43 : vector<4x128xf32>
    %45 = vector.extract_strided_slice %29 {offsets = [2, 0], sizes = [1, 128], strides = [1, 1]} : vector<4x128xf32> to vector<1x128xf32>
    %46 = vector.extract_strided_slice %30 {offsets = [0, 2], sizes = [4, 1], strides = [1, 1]} : vector<4x5xf32> to vector<4x1xf32>
    %47 = vector.broadcast %45 : vector<1x128xf32> to vector<4x128xf32>
    %48 = vector.broadcast %46 : vector<4x1xf32> to vector<4x128xf32>
    %49 = arith.mulf %47, %48 : vector<4x128xf32>
    %50 = arith.addf %44, %49 : vector<4x128xf32>
    %51 = vector.extract_strided_slice %29 {offsets = [3, 0], sizes = [1, 128], strides = [1, 1]} : vector<4x128xf32> to vector<1x128xf32>
    %52 = vector.extract_strided_slice %30 {offsets = [0, 3], sizes = [4, 1], strides = [1, 1]} : vector<4x5xf32> to vector<4x1xf32>
    %53 = vector.broadcast %51 : vector<1x128xf32> to vector<4x128xf32>
    %54 = vector.broadcast %52 : vector<4x1xf32> to vector<4x128xf32>
    %55 = arith.mulf %53, %54 : vector<4x128xf32>
    %56 = arith.addf %50, %55 : vector<4x128xf32>
    %cst_4 = arith.constant 0.000000e+00 : f32
    %57 = vector.broadcast %cst_4 : f32 to vector<4x128xf32>
    %58 = arith.maximumf %56, %57 : vector<4x128xf32>
    %c16 = arith.constant 16 : index
    %c0_5 = arith.constant 0 : index
    %59 = vector.load %arg1[%c16, %c0_5] : memref<35x5xf32, #tpu.memory_space<vmem>>, vector<8x5xf32>
    %60 = vector.extract_strided_slice %58 {offsets = [0, 0], sizes = [1, 128], strides = [1, 1]} : vector<4x128xf32> to vector<1x128xf32>
    %61 = vector.extract_strided_slice %59 {offsets = [0, 0], sizes = [8, 1], strides = [1, 1]} : vector<8x5xf32> to vector<8x1xf32>
    %62 = vector.broadcast %60 : vector<1x128xf32> to vector<8x128xf32>
    %63 = vector.broadcast %61 : vector<8x1xf32> to vector<8x128xf32>
    %64 = arith.mulf %62, %63 : vector<8x128xf32>
    %65 = vector.extract_strided_slice %59 {offsets = [0, 4], sizes = [8, 1], strides = [1, 1]} : vector<8x5xf32> to vector<8x1xf32>
    %66 = vector.broadcast %65 : vector<8x1xf32> to vector<8x128xf32>
    %67 = arith.addf %64, %66 : vector<8x128xf32>
    %68 = vector.extract_strided_slice %58 {offsets = [1, 0], sizes = [1, 128], strides = [1, 1]} : vector<4x128xf32> to vector<1x128xf32>
    %69 = vector.extract_strided_slice %59 {offsets = [0, 1], sizes = [8, 1], strides = [1, 1]} : vector<8x5xf32> to vector<8x1xf32>
    %70 = vector.broadcast %68 : vector<1x128xf32> to vector<8x128xf32>
    %71 = vector.broadcast %69 : vector<8x1xf32> to vector<8x128xf32>
    %72 = arith.mulf %70, %71 : vector<8x128xf32>
    %73 = arith.addf %67, %72 : vector<8x128xf32>
    %74 = vector.extract_strided_slice %58 {offsets = [2, 0], sizes = [1, 128], strides = [1, 1]} : vector<4x128xf32> to vector<1x128xf32>
    %75 = vector.extract_strided_slice %59 {offsets = [0, 2], sizes = [8, 1], strides = [1, 1]} : vector<8x5xf32> to vector<8x1xf32>
    %76 = vector.broadcast %74 : vector<1x128xf32> to vector<8x128xf32>
    %77 = vector.broadcast %75 : vector<8x1xf32> to vector<8x128xf32>
    %78 = arith.mulf %76, %77 : vector<8x128xf32>
    %79 = arith.addf %73, %78 : vector<8x128xf32>
    %80 = vector.extract_strided_slice %58 {offsets = [3, 0], sizes = [1, 128], strides = [1, 1]} : vector<4x128xf32> to vector<1x128xf32>
    %81 = vector.extract_strided_slice %59 {offsets = [0, 3], sizes = [8, 1], strides = [1, 1]} : vector<8x5xf32> to vector<8x1xf32>
    %82 = vector.broadcast %80 : vector<1x128xf32> to vector<8x128xf32>
    %83 = vector.broadcast %81 : vector<8x1xf32> to vector<8x128xf32>
    %84 = arith.mulf %82, %83 : vector<8x128xf32>
    %85 = arith.addf %79, %84 : vector<8x128xf32>
    %cst_6 = arith.constant 0.000000e+00 : f32
    %86 = vector.broadcast %cst_6 : f32 to vector<8x128xf32>
    %87 = arith.maximumf %85, %86 : vector<8x128xf32>
    %c24 = arith.constant 24 : index
    %c0_7 = arith.constant 0 : index
    %88 = vector.load %arg1[%c24, %c0_7] : memref<35x5xf32, #tpu.memory_space<vmem>>, vector<1x5xf32>
    %89 = vector.extract_strided_slice %87 {offsets = [0, 0], sizes = [1, 128], strides = [1, 1]} : vector<8x128xf32> to vector<1x128xf32>
    %90 = vector.extract_strided_slice %88 {offsets = [0, 0], sizes = [1, 1], strides = [1, 1]} : vector<1x5xf32> to vector<1x1xf32>
    %91 = vector.broadcast %90 : vector<1x1xf32> to vector<1x128xf32>
    %92 = arith.mulf %89, %91 : vector<1x128xf32>
    %93 = vector.extract_strided_slice %88 {offsets = [0, 4], sizes = [1, 1], strides = [1, 1]} : vector<1x5xf32> to vector<1x1xf32>
    %94 = vector.broadcast %93 : vector<1x1xf32> to vector<1x128xf32>
    %95 = arith.addf %92, %94 : vector<1x128xf32>
    %96 = vector.extract_strided_slice %87 {offsets = [1, 0], sizes = [1, 128], strides = [1, 1]} : vector<8x128xf32> to vector<1x128xf32>
    %97 = vector.extract_strided_slice %88 {offsets = [0, 1], sizes = [1, 1], strides = [1, 1]} : vector<1x5xf32> to vector<1x1xf32>
    %98 = vector.broadcast %97 : vector<1x1xf32> to vector<1x128xf32>
    %99 = arith.mulf %96, %98 : vector<1x128xf32>
    %100 = arith.addf %95, %99 : vector<1x128xf32>
    %101 = vector.extract_strided_slice %87 {offsets = [2, 0], sizes = [1, 128], strides = [1, 1]} : vector<8x128xf32> to vector<1x128xf32>
    %102 = vector.extract_strided_slice %88 {offsets = [0, 2], sizes = [1, 1], strides = [1, 1]} : vector<1x5xf32> to vector<1x1xf32>
    %103 = vector.broadcast %102 : vector<1x1xf32> to vector<1x128xf32>
    %104 = arith.mulf %101, %103 : vector<1x128xf32>
    %105 = arith.addf %100, %104 : vector<1x128xf32>
    %106 = vector.extract_strided_slice %87 {offsets = [3, 0], sizes = [1, 128], strides = [1, 1]} : vector<8x128xf32> to vector<1x128xf32>
    %107 = vector.extract_strided_slice %88 {offsets = [0, 3], sizes = [1, 1], strides = [1, 1]} : vector<1x5xf32> to vector<1x1xf32>
    %108 = vector.broadcast %107 : vector<1x1xf32> to vector<1x128xf32>
    %109 = arith.mulf %106, %108 : vector<1x128xf32>
    %110 = arith.addf %105, %109 : vector<1x128xf32>
    %c0_8 = arith.constant 0 : index
    %c0_9 = arith.constant 0 : index
    %111 = vector.load %arg3[%c0_8, %c0_9] : memref<4x128xf32, #tpu.memory_space<vmem>>, vector<1x128xf32>
    tpu.vector_store %arg3[%c0_8, %c0_9], %110 {strides = array<i32>} : memref<4x128xf32, #tpu.memory_space<vmem>>, vector<1x128xf32>,
    %c32 = arith.constant 32 : index
    %c0_10 = arith.constant 0 : index
    %112 = vector.load %arg1[%c32, %c0_10] : memref<35x5xf32, #tpu.memory_space<vmem>>, vector<3x5xf32>
    %113 = vector.extract_strided_slice %87 {offsets = [4, 0], sizes = [1, 128], strides = [1, 1]} : vector<8x128xf32> to vector<1x128xf32>
    %114 = vector.extract_strided_slice %112 {offsets = [0, 0], sizes = [3, 1], strides = [1, 1]} : vector<3x5xf32> to vector<3x1xf32>
    %115 = vector.broadcast %113 : vector<1x128xf32> to vector<3x128xf32>
    %116 = vector.broadcast %114 : vector<3x1xf32> to vector<3x128xf32>
    %117 = arith.mulf %115, %116 : vector<3x128xf32>
    %118 = vector.extract_strided_slice %112 {offsets = [0, 4], sizes = [3, 1], strides = [1, 1]} : vector<3x5xf32> to vector<3x1xf32>
    %119 = vector.broadcast %118 : vector<3x1xf32> to vector<3x128xf32>
    %120 = arith.addf %117, %119 : vector<3x128xf32>
    %121 = vector.extract_strided_slice %87 {offsets = [5, 0], sizes = [1, 128], strides = [1, 1]} : vector<8x128xf32> to vector<1x128xf32>
    %122 = vector.extract_strided_slice %112 {offsets = [0, 1], sizes = [3, 1], strides = [1, 1]} : vector<3x5xf32> to vector<3x1xf32>
    %123 = vector.broadcast %121 : vector<1x128xf32> to vector<3x128xf32>
    %124 = vector.broadcast %122 : vector<3x1xf32> to vector<3x128xf32>
    %125 = arith.mulf %123, %124 : vector<3x128xf32>
    %126 = arith.addf %120, %125 : vector<3x128xf32>
    %127 = vector.extract_strided_slice %87 {offsets = [6, 0], sizes = [1, 128], strides = [1, 1]} : vector<8x128xf32> to vector<1x128xf32>
    %128 = vector.extract_strided_slice %112 {offsets = [0, 2], sizes = [3, 1], strides = [1, 1]} : vector<3x5xf32> to vector<3x1xf32>
    %129 = vector.broadcast %127 : vector<1x128xf32> to vector<3x128xf32>
    %130 = vector.broadcast %128 : vector<3x1xf32> to vector<3x128xf32>
    %131 = arith.mulf %129, %130 : vector<3x128xf32>
    %132 = arith.addf %126, %131 : vector<3x128xf32>
    %133 = vector.extract_strided_slice %87 {offsets = [7, 0], sizes = [1, 128], strides = [1, 1]} : vector<8x128xf32> to vector<1x128xf32>
    %134 = vector.extract_strided_slice %112 {offsets = [0, 3], sizes = [3, 1], strides = [1, 1]} : vector<3x5xf32> to vector<3x1xf32>
    %135 = vector.broadcast %133 : vector<1x128xf32> to vector<3x128xf32>
    %136 = vector.broadcast %134 : vector<3x1xf32> to vector<3x128xf32>
    %137 = arith.mulf %135, %136 : vector<3x128xf32>
    %138 = arith.addf %132, %137 : vector<3x128xf32>
    %c1 = arith.constant 1 : index
    %c0_11 = arith.constant 0 : index
    %139 = vector.load %arg3[%c1, %c0_11] : memref<4x128xf32, #tpu.memory_space<vmem>>, vector<3x128xf32>
    tpu.vector_store %arg3[%c1, %c0_11], %138 {strides = array<i32>} : memref<4x128xf32, #tpu.memory_space<vmem>>, vector<3x128xf32>,
    return
  }
  func.func @transform_0(%arg0: i32) -> (i32, i32) {
    %c0_i32 = arith.constant 0 : i32
    %c0_i32_0 = arith.constant 0 : i32
    %c0_i32_1 = arith.constant 0 : i32
    return %c0_i32, %c0_i32_0 : i32, i32
  }
  func.func @transform_1(%arg0: i32) -> (i32, i32) {
    %c0_i32 = arith.constant 0 : i32
    %c0_i32_0 = arith.constant 0 : i32
    return %c0_i32, %arg0 : i32, i32
  }
  func.func @transform_2(%arg0: i32) -> (i32, i32) {
    %c0_i32 = arith.constant 0 : i32
    %c0_i32_0 = arith.constant 0 : i32
    return %c0_i32, %arg0 : i32, i32
  }
}

</mosaic_0001>

<llo_original>
// kernel: tpu_custom_call.1
$region0: #{tpu_custom_call.1}
  #allocation0 [shape = 'u32[]', space=smem, size = 0x4, offset = 0x4, fixed_abs, tag = 'smem constant byte address 0x4 - core index']
  #allocation1 [shape = 'u32[144,128]{1,0:T(1,128)}', space=vmem, size = 0x12000, scoped, tag = 'internal scratch']
  %s0 = inlined_call_operand.vmem [shape: f32[35,5], index: 0, kind: input, shape index: {}]
  %s1 = inlined_call_operand.vmem [shape: f32[4,128], index: 1, kind: input, shape index: {}]
  %s2 = inlined_call_operand.hbm [shape: f32[4,128], index: 2, kind: output, shape index: {}]
  %s3 = sld [smem:[#allocation0]]
  $region18: #{tpu_custom_call.1} parent=0
    _
  %s5 = ssub.s32 1, %s3
  %s6 = scalar_select 0, %s5, %s3
  $region1: #{tpu_custom_call.1} parent=0
    #allocation2 [shape = 'u8[2048]{0}', space=vmem, size = 0x800, scoped, tag = 'output window, operand 0, single buffered']
    #allocation3 [shape = 's32[1]{0}', space=sflag, size = 0x4, scoped, tag = 'scoped memory for tpu_custom_call.1']
    %7 = vsyncpa [#allocation3], 0
    // Predicated region
    $region2: #{tpu_custom_call.1} parent=1 // pred_check
      _
    $region3: #{tpu_custom_call.1} parent=1 // pred_check_branch
      %9 = sbr.rel (0) target = $region5
    $region4: #{tpu_custom_call.1} parent=1 // pred_region
      _
    $region5: #{tpu_custom_call.1} parent=1 // pred_fallthru
      _
    // Predicated region
    $region6: #{tpu_custom_call.1} parent=1 // pred_check
      _
    $region7: #{tpu_custom_call.1} parent=1 // pred_check_branch
      %11 = sbr.rel (0) target = $region9
    $region8: #{tpu_custom_call.1} parent=1 // pred_region
      _
    $region9: #{tpu_custom_call.1} parent=1 // pred_fallthru
      _
    %v12 = vld [vmem:[%s1] sm:$0xf]
    %v13 = vld [vmem:[%s0] sm:$0xf]
    %v14 = vlaneseq
    %v15 = vshrl.u32 %v14, 7
    %v16 = vsub.s32 0, %v15
    %v17 = vrot.slane %v12, %v16
    %19 = vset.pattern.permute.xlu0 0
    %20 = vperm.xlu0 %19, %v13
    %v21 = vpop.permute.xlu0 %20
    %v23 = vmul.f32 %v17, %v21
    %24 = vset.pattern.permute.xlu0 4
    %25 = vperm.xlu0 %24, %v13
    %v26 = vpop.permute.xlu0 %25
    %v28 = vadd.f32 %v23, %v26
    %v29 = vlaneseq
    %v30 = vshrl.u32 %v29, 7
    %v31 = vsub.s32 1, %v30
    %v32 = vrot.slane %v12, %v31
    %33 = vset.pattern.permute.xlu0 1
    %34 = vperm.xlu0 %33, %v13
    %v35 = vpop.permute.xlu0 %34
    %v37 = vmul.f32 %v32, %v35
    %v38 = vadd.f32 %v28, %v37
    %v39 = vlaneseq
    %v40 = vshrl.u32 %v39, 7
    %v41 = vsub.s32 2, %v40
    %v42 = vrot.slane %v12, %v41
    %43 = vset.pattern.permute.xlu0 2
    %44 = vperm.xlu0 %43, %v13
    %v45 = vpop.permute.xlu0 %44
    %v47 = vmul.f32 %v42, %v45
    %v48 = vadd.f32 %v38, %v47
    %v49 = vlaneseq
    %v50 = vshrl.u32 %v49, 7
    %v51 = vsub.s32 3, %v50
    %v52 = vrot.slane %v12, %v51
    %53 = vset.pattern.permute.xlu0 3
    %54 = vperm.xlu0 %53, %v13
    %v55 = vpop.permute.xlu0 %54
    %v57 = vmul.f32 %v52, %v55
    %v58 = vadd.f32 %v48, %v57
    %v59 = vmax.f32 %v58, 0.0
    %v60 = vld [vmem:[%s0 + $0x8] sm:$0xf]
    %v61 = vlaneseq
    %v62 = vshrl.u32 %v61, 7
    %v63 = vsub.s32 0, %v62
    %v64 = vrot.slane %v59, %v63
    %66 = vset.pattern.permute.xlu0 0
    %67 = vperm.xlu0 %66, %v60
    %v68 = vpop.permute.xlu0 %67
    %v70 = vmul.f32 %v64, %v68
    %71 = vset.pattern.permute.xlu0 4
    %72 = vperm.xlu0 %71, %v60
    %v73 = vpop.permute.xlu0 %72
    %v75 = vadd.f32 %v70, %v73
    %v76 = vlaneseq
    %v77 = vshrl.u32 %v76, 7
    %v78 = vsub.s32 1, %v77
    %v79 = vrot.slane %v59, %v78
    %80 = vset.pattern.permute.xlu0 1
    %81 = vperm.xlu0 %80, %v60
    %v82 = vpop.permute.xlu0 %81
    %v84 = vmul.f32 %v79, %v82
    %v85 = vadd.f32 %v75, %v84
    %v86 = vlaneseq
    %v87 = vshrl.u32 %v86, 7
    %v88 = vsub.s32 2, %v87
    %v89 = vrot.slane %v59, %v88
    %90 = vset.pattern.permute.xlu0 2
    %91 = vperm.xlu0 %90, %v60
    %v92 = vpop.permute.xlu0 %91
    %v94 = vmul.f32 %v89, %v92
    %v95 = vadd.f32 %v85, %v94
    %v96 = vlaneseq
    %v97 = vshrl.u32 %v96, 7
    %v98 = vsub.s32 3, %v97
    %v99 = vrot.slane %v59, %v98
    %100 = vset.pattern.permute.xlu0 3
    %101 = vperm.xlu0 %100, %v60
    %v102 = vpop.permute.xlu0 %101
    %v104 = vmul.f32 %v99, %v102
    %v105 = vadd.f32 %v95, %v104
    %v106 = vmax.f32 %v105, 0.0
    %v107 = vld [vmem:[%s0 + $0x10] sm:$0xff]
    %v108 = vlaneseq
    %v109 = vshrl.u32 %v108, 7
    %v110 = vsub.s32 0, %v109
    %v111 = vrot.slane %v106, %v110
    %113 = vset.pattern.permute.xlu0 0
    %114 = vperm.xlu0 %113, %v107
    %v115 = vpop.permute.xlu0 %114
    %v117 = vmul.f32 %v111, %v115
    %118 = vset.pattern.permute.xlu0 4
    %119 = vperm.xlu0 %118, %v107
    %v120 = vpop.permute.xlu0 %119
    %v122 = vadd.f32 %v117, %v120
    %v123 = vlaneseq
    %v124 = vshrl.u32 %v123, 7
    %v125 = vsub.s32 1, %v124
    %v126 = vrot.slane %v106, %v125
    %127 = vset.pattern.permute.xlu0 1
    %128 = vperm.xlu0 %127, %v107
    %v129 = vpop.permute.xlu0 %128
    %v131 = vmul.f32 %v126, %v129
    %v132 = vadd.f32 %v122, %v131
    %v133 = vlaneseq
    %v134 = vshrl.u32 %v133, 7
    %v135 = vsub.s32 2, %v134
    %v136 = vrot.slane %v106, %v135
    %137 = vset.pattern.permute.xlu0 2
    %138 = vperm.xlu0 %137, %v107
    %v139 = vpop.permute.xlu0 %138
    %v141 = vmul.f32 %v136, %v139
    %v142 = vadd.f32 %v132, %v141
    %v143 = vlaneseq
    %v144 = vshrl.u32 %v143, 7
    %v145 = vsub.s32 3, %v144
    %v146 = vrot.slane %v106, %v145
    %147 = vset.pattern.permute.xlu0 3
    %148 = vperm.xlu0 %147, %v107
    %v149 = vpop.permute.xlu0 %148
    %v151 = vmul.f32 %v146, %v149
    %v152 = vadd.f32 %v142, %v151
    %v153 = vmax.f32 %v152, 0.0
    %v154 = vld [vmem:[%s0 + $0x18] sm:$0x1]
    %156 = vset.pattern.permute.xlu0 0
    %157 = vperm.xlu0 %156, %v154
    %v158 = vpop.permute.xlu0 %157
    %v160 = vmul.f32 %v153, %v158
    %161 = vset.pattern.permute.xlu0 4
    %162 = vperm.xlu0 %161, %v154
    %v163 = vpop.permute.xlu0 %162
    %v165 = vadd.f32 %v160, %v163
    %166 = vset.pattern.permute.xlu0 1
    %167 = vperm.xlu0 %166, %v154
    %v168 = vpop.permute.xlu0 %167
    %v169 = vrot.slane %v168, 7
    %v171 = vmul.f32 %v153, %v169
    %v173 = vrot.slane %v171, 1
    %v175 = vadd.f32 %v165, %v173
    %176 = vset.pattern.permute.xlu0 2
    %177 = vperm.xlu0 %176, %v154
    %v178 = vpop.permute.xlu0 %177
    %v179 = vrot.slane %v178, 6
    %v181 = vmul.f32 %v153, %v179
    %v183 = vrot.slane %v181, 2
    %v185 = vadd.f32 %v175, %v183
    %186 = vset.pattern.permute.xlu0 3
    %187 = vperm.xlu0 %186, %v154
    %v188 = vpop.permute.xlu0 %187
    %v189 = vrot.slane %v188, 5
    %v191 = vmul.f32 %v153, %v189
    %v193 = vrot.slane %v191, 3
    %v195 = vadd.f32 %v185, %v193
    %196 = vst [vmem:[#allocation2] sm:$0x1] %v195
    %v197 = vld [vmem:[%s0 + $0x20] sm:$0x7]
    %v198 = vlaneseq
    %v199 = vshrl.u32 %v198, 7
    %v200 = vsub.s32 4, %v199
    %v201 = vrot.slane %v153, %v200
    %203 = vset.pattern.permute.xlu0 0
    %204 = vperm.xlu0 %203, %v197
    %v205 = vpop.permute.xlu0 %204
    %v207 = vmul.f32 %v201, %v205
    %208 = vset.pattern.permute.xlu0 4
    %209 = vperm.xlu0 %208, %v197
    %v210 = vpop.permute.xlu0 %209
    %v212 = vadd.f32 %v207, %v210
    %v213 = vlaneseq
    %v214 = vshrl.u32 %v213, 7
    %v215 = vsub.s32 5, %v214
    %v216 = vrot.slane %v153, %v215
    %217 = vset.pattern.permute.xlu0 1
    %218 = vperm.xlu0 %217, %v197
    %v219 = vpop.permute.xlu0 %218
    %v221 = vmul.f32 %v216, %v219
    %v222 = vadd.f32 %v212, %v221
    %v223 = vlaneseq
    %v224 = vshrl.u32 %v223, 7
    %v225 = vsub.s32 6, %v224
    %v226 = vrot.slane %v153, %v225
    %227 = vset.pattern.permute.xlu0 2
    %228 = vperm.xlu0 %227, %v197
    %v229 = vpop.permute.xlu0 %228
    %v231 = vmul.f32 %v226, %v229
    %v232 = vadd.f32 %v222, %v231
    %v233 = vlaneseq
    %v234 = vshrl.u32 %v233, 7
    %v235 = vsub.s32 7, %v234
    %v236 = vrot.slane %v153, %v235
    %237 = vset.pattern.permute.xlu0 3
    %238 = vperm.xlu0 %237, %v197
    %v239 = vpop.permute.xlu0 %238
    %v241 = vmul.f32 %v236, %v239
    %v242 = vadd.f32 %v232, %v241
    %243 = vst [vmem:[#allocation2 + $0x1] sm:$0x7] %v242
    // Predicated region
    $region10: #{tpu_custom_call.1} parent=1 // pred_check
      _
    $region11: #{tpu_custom_call.1} parent=1 // pred_check_branch
      %245 = sbr.rel (0) target = $region13
    $region12: #{tpu_custom_call.1} parent=1 // pred_region
      %s247 = ssub.s32 64, 64
      %248 = vsyncadd [#allocation3], %s247
      %s250 = sshll.u32 [#allocation2], 4
      %s251 = int_to_ptr.vmem [resolvable:$true] %s250
      %253 = dma.vmem_to_hbm [thread:$0]  %s251, 64, %s2, [#allocation3]
    $region13: #{tpu_custom_call.1} parent=1 // pred_fallthru
      _
    // Predicated region
    $region14: #{tpu_custom_call.1} parent=1 // pred_check
      _
    $region15: #{tpu_custom_call.1} parent=1 // pred_check_branch
      %255 = sbr.rel (0) target = $region17
    $region16: #{tpu_custom_call.1} parent=1 // pred_region
      %256 = dma.done [#allocation3], 64
    $region17: #{tpu_custom_call.1} parent=1 // pred_fallthru
      _
    %257 = vsyncpa [#allocation3], 1

</llo_original>
